<compile_context>
chip_gen: v7x
topology: tpu7x:2x2x1
jax: 0.10.0
libtpu: 0.0.40
codegen_flags: <defaults>
</compile_context>

<pallas_src>
import numpy as np
import jax
import jax.numpy as jnp
from jax.experimental import pallas as pl
from jax.experimental.pallas import tpu as pltpu


class DefaultConfig:
    pyramid_levels = [3, 4, 5, 6, 7]
    strides = [8, 16, 32, 64, 128]
    sizes = [32, 64, 128, 256, 512]
    ratios = [0.5, 1, 2]
    scales = [2 ** 0, 2 ** (1.0 / 3.0), 2 ** (2.0 / 3.0)]


# Levels whose stride is in this set go through the Pallas kernel; the rest
# (tiny, static) are constant-folded on the host.
_PALLAS_STRIDES = (8,)

_TILE_BYTES = 2 << 20  # ~2 MiB per output block; x2 double-buffered fits all gens


def generate_anchors_np(base_size, ratios, scales):
    """Exact mirror of GenAnchors.generate_anchors (f64 math, f32 cast at end,
    exactly like numpy -> torch.from_numpy(...).float())."""
    num_anchors = len(ratios) * len(scales)
    anchors = np.zeros((num_anchors, 4))
    anchors[:, 2:] = base_size * np.tile(scales, (2, len(ratios))).T
    areas = anchors[:, 2] * anchors[:, 3]
    anchors[:, 2] = np.sqrt(areas / np.repeat(ratios, len(scales)))
    anchors[:, 3] = anchors[:, 2] * np.repeat(ratios, len(scales))
    anchors[:, 0::2] -= np.tile(anchors[:, 2] * 0.5, (2, 1)).T
    anchors[:, 1::2] -= np.tile(anchors[:, 3] * 0.5, (2, 1)).T
    return anchors.astype(np.float32)


def _level_patterns(anchors_f32, w_pos, stride):
    """Fold anchors + x-shift + stride//2 into per-lane f32 constants.

    lane l = x*36 + a*4 + c;   value(y, l) = base[l] + y * ymul[l]
    x coords (c in {0,2}): fully folded into base; ymul = 0.
    y coords (c in {1,3}): base = half + a;        ymul = stride.
    All folding done in float32 to match torch's float32 arithmetic.
    """
    A = anchors_f32.shape[0]
    a_flat = anchors_f32.reshape(-1)                                   # (A*4,)
    is_x = (np.tile(np.arange(4), A) % 2 == 0)                         # (A*4,)
    half = np.float32(stride // 2)
    xs = (np.arange(w_pos, dtype=np.float32) * np.float32(stride))[:, None]
    base_x = (xs + half) + a_flat[None, :]                             # (w_pos, A*4)
    base_y = np.broadcast_to(half + a_flat[None, :], (w_pos, A * 4))
    base = np.where(is_x[None, :], base_x, base_y).astype(np.float32)
    ymul = np.where(is_x[None, :], np.float32(0.0), np.float32(stride))
    ymul = np.broadcast_to(ymul, (w_pos, A * 4)).astype(np.float32)
    pat = np.stack([base.reshape(-1), ymul.reshape(-1)], axis=0)       # (2, lane_w)
    return np.ascontiguousarray(pat, dtype=np.float32)


def _shift_level_np(anchors_f32, h_pos, w_pos, stride):
    """Host constant-fold of one (small) level; mirrors the torch shift()."""
    sx = np.arange(w_pos, dtype=np.float32) * np.float32(stride)
    sy = np.arange(h_pos, dtype=np.float32) * np.float32(stride)
    yy, xx = np.meshgrid(sy, sx, indexing="ij")
    xx = xx.reshape(-1)
    yy = yy.reshape(-1)
    coords = np.stack([xx, yy, xx, yy], -1) + np.float32(stride // 2)
    return (coords[:, None, :] + anchors_f32[None, :, :]).reshape(-1, 4).astype(np.float32)


def _shift_kernel(pat_ref, ycol_ref, out_ref):
    """out[y, l] = base[l] + ycol[y] * ymul[l]  -- pure mul-add, store-bound."""
    base = pat_ref[0:1, :]        # (1, lane_w)
    ymul = pat_ref[1:2, :]        # (1, lane_w)
    out_ref[...] = base + ycol_ref[...] * ymul


def _rows_per_tile(h_pos, lane_w):
    if h_pos <= 8:
        return h_pos
    # Largest tile <= ~2 MiB, rounded down to a multiple of 8.
    th = max(8, min(h_pos, _TILE_BYTES // (lane_w * 4)))
    th = (th // 8) * 8
    # Guarantee several grid steps so both v7x TensorCores get work.
    min_steps = 4 if h_pos >= 32 else 2
    cap = -(-h_pos // min_steps)           # ceil(h_pos / min_steps)
    cap = max(8, ((cap + 7) // 8) * 8)     # round UP to a multiple of 8
    th = max(8, min(th, cap))
    return h_pos if th >= h_pos else th


def shift_level_pallas(anchors_f32, h_pos, w_pos, stride):
    A = anchors_f32.shape[0]
    lane_w = w_pos * A * 4
    if h_pos == 0 or lane_w == 0:
        return jnp.zeros((0, 4), jnp.float32)
    pat = _level_patterns(anchors_f32, w_pos, stride)                  # (2, lane_w)
    ycol = np.arange(h_pos, dtype=np.float32).reshape(h_pos, 1)        # (h_pos, 1)
    th = _rows_per_tile(h_pos, lane_w)
    grid = (pl.cdiv(h_pos, th),)
    out = pl.pallas_call(
        _shift_kernel,
        out_shape=jax.ShapeDtypeStruct((h_pos, lane_w), jnp.float32),
        grid=grid,
        in_specs=[pl.BlockSpec((2, lane_w), lambda i: (0, 0)),
                  pl.BlockSpec((th, 1), lambda i: (i, 0))],
        out_specs=pl.BlockSpec((th, lane_w), lambda i: (i, 0)),
        compiler_params=pltpu.CompilerParams(
            dimension_semantics=("parallel",)),
        cost_estimate=pl.CostEstimate(
            flops=2 * h_pos * lane_w,
            transcendentals=0,
            bytes_accessed=(h_pos * lane_w + 2 * lane_w + h_pos) * 4),
    )(jnp.asarray(pat), jnp.asarray(ycol))
    # Rows ordered (y, x, anchor); columns = 4 coords -> torch ordering.
    return out.reshape(-1, 4)


def gen_anchors(image, config=DefaultConfig):
    """JAX equivalent of GenAnchors.forward.  image: NCHW (only H, W used)."""
    H, W = int(image.shape[2]), int(image.shape[3])
    ratios = np.array(config.ratios)
    scales = np.array(config.scales)

    pieces = []
    const_chunks = []

    def flush_consts():
        if const_chunks:
            pieces.append(jnp.asarray(np.concatenate(const_chunks, axis=0)))
            const_chunks.clear()

    for size, stride in zip(config.sizes, config.strides):
        anchors = generate_anchors_np(size, ratios, scales)
        # torch.arange(0, (H/stride)*stride, stride) element counts (float semantics)
        h_pos = len(np.arange(0, (H / stride) * stride, stride))
        w_pos = len(np.arange(0, (W / stride) * stride, stride))
        if stride in _PALLAS_STRIDES:
            flush_consts()
            pieces.append(shift_level_pallas(anchors, h_pos, w_pos, stride))
        else:
            # Tiny static levels: constant-folded on the host (pure function
            # of static H/W), merged into a single baked device constant.
            const_chunks.append(_shift_level_np(anchors, h_pos, w_pos, stride))
    flush_consts()
    # Single 2-piece concat: [pallas level-0 output, baked upper-level tail].
    # Fusing the ragged per-level lane widths into one pallas_call is not
    # expressible with static BlockSpecs; this is the endorsed alternative.
    return pieces[0] if len(pieces) == 1 else jnp.concatenate(pieces, axis=0)


def _reference_np(H, W, config=DefaultConfig):
    """Pure numpy reference mirroring the PyTorch module (for verification)."""
    refs = []
    for size, stride in zip(config.sizes, config.strides):
        a = generate_anchors_np(size, np.array(config.ratios), np.array(config.scales))
        sx = np.arange(0, (W / stride) * stride, stride).astype(np.float32)
        sy = np.arange(0, (H / stride) * stride, stride).astype(np.float32)
        yy, xx = np.meshgrid(sy, sx, indexing="ij")
        xx = xx.reshape(-1)
        yy = yy.reshape(-1)
        coords = np.stack([xx, yy, xx, yy], -1) + stride // 2
        refs.append((coords[:, None, :] + a[None, :, :]).reshape(-1, 4))
    return np.concatenate(refs, 0).astype(np.float32)


if __name__ == "__main__":
    key = jax.random.PRNGKey(0)

    # Small primary test (NCHW, spatial 16).
    image = jax.random.normal(key, (2, 4, 16, 16), dtype=jnp.float32)
    out = jax.block_until_ready(gen_anchors(image))
    ref = _reference_np(16, 16)
    assert out.shape == ref.shape, (out.shape, ref.shape)
    np.testing.assert_allclose(np.asarray(out), ref, rtol=1e-5, atol=1e-4)

    # Larger shape exercises the real tiled path: grid > 1, partial final
    # row-block, >128-lane stores.
    image2 = jnp.zeros((1, 3, 320, 256), dtype=jnp.float32)
    out2 = jax.block_until_ready(gen_anchors(image2))
    ref2 = _reference_np(320, 256)
    assert out2.shape == ref2.shape, (out2.shape, ref2.shape)
    np.testing.assert_allclose(np.asarray(out2), ref2, rtol=1e-5, atol=1e-4)

    print("KERNEL_OK")
</pallas_src>

<mosaic_0001>
module attributes {stable_mosaic.version = 11 : i64} {
  func.func @_shift_kernel(%arg0: i32, %arg1: memref<2x72xf32, #tpu.memory_space<vmem>>, %arg2: memref<2x1xf32, #tpu.memory_space<vmem>>, %arg3: memref<2x72xf32, #tpu.memory_space<vmem>>) attributes {dimension_semantics = [#tpu.dimension_semantics<parallel>], iteration_bounds = array<i64: 1>, scalar_prefetch = 0 : i64, scratch_operands = 0 : i64, tpu.core_type = #tpu.core_type<tc>, window_params = [{pipeline_mode = #tpu.pipeline_mode<synchronous>, transform_indices = @transform_0, window_bounds = array<i64: 2, 72>}, {transform_indices = @transform_1, window_bounds = array<i64: 2, 1>}, {transform_indices = @transform_2, window_bounds = array<i64: 2, 72>}]} {
    %c0 = arith.constant 0 : index
    %c0_0 = arith.constant 0 : index
    %0 = vector.load %arg1[%c0, %c0_0] : memref<2x72xf32, #tpu.memory_space<vmem>>, vector<1x72xf32>
    %c1 = arith.constant 1 : index
    %c0_1 = arith.constant 0 : index
    %1 = vector.load %arg1[%c1, %c0_1] : memref<2x72xf32, #tpu.memory_space<vmem>>, vector<1x72xf32>
    %c0_2 = arith.constant 0 : index
    %c0_3 = arith.constant 0 : index
    %2 = vector.load %arg2[%c0_2, %c0_3] : memref<2x1xf32, #tpu.memory_space<vmem>>, vector<2x1xf32>
    %3 = vector.broadcast %2 : vector<2x1xf32> to vector<2x72xf32>
    %4 = vector.broadcast %1 : vector<1x72xf32> to vector<2x72xf32>
    %5 = arith.mulf %3, %4 : vector<2x72xf32>
    %6 = vector.broadcast %0 : vector<1x72xf32> to vector<2x72xf32>
    %7 = arith.addf %6, %5 : vector<2x72xf32>
    %c0_4 = arith.constant 0 : index
    %c0_5 = arith.constant 0 : index
    %8 = vector.load %arg3[%c0_4, %c0_5] : memref<2x72xf32, #tpu.memory_space<vmem>>, vector<2x72xf32>
    tpu.vector_store %arg3[%c0_4, %c0_5], %7 {strides = array<i32>} : memref<2x72xf32, #tpu.memory_space<vmem>>, vector<2x72xf32>,
    return
  }
  func.func @transform_0(%arg0: i32) -> (i32, i32) {
    %c0_i32 = arith.constant 0 : i32
    %c0_i32_0 = arith.constant 0 : i32
    %c0_i32_1 = arith.constant 0 : i32
    return %c0_i32, %c0_i32_0 : i32, i32
  }
  func.func @transform_1(%arg0: i32) -> (i32, i32) {
    %c0_i32 = arith.constant 0 : i32
    %c0_i32_0 = arith.constant 0 : i32
    return %arg0, %c0_i32 : i32, i32
  }
  func.func @transform_2(%arg0: i32) -> (i32, i32) {
    %c0_i32 = arith.constant 0 : i32
    %c0_i32_0 = arith.constant 0 : i32
    return %arg0, %c0_i32 : i32, i32
  }
}

</mosaic_0001>

<llo_original>
// kernel: tpu_custom_call.1
$region0: #{tpu_custom_call.1}
  #allocation0 [shape = 'u32[]', space=smem, size = 0x4, offset = 0x4, fixed_abs, tag = 'smem constant byte address 0x4 - core index']
  #allocation1 [shape = 'u32[144,128]{1,0:T(1,128)}', space=vmem, size = 0x12000, scoped, tag = 'internal scratch']
  %s0 = inlined_call_operand.vmem [shape: f32[2,72], index: 0, kind: input, shape index: {}]
  %s1 = inlined_call_operand.vmem [shape: f32[2,1], index: 1, kind: input, shape index: {}]
  %s2 = inlined_call_operand.hbm [shape: f32[2,72], index: 2, kind: output, shape index: {}]
  %s3 = sld [smem:[#allocation0]]
  $region18: #{tpu_custom_call.1} parent=0
    _
  %s5 = ssub.s32 1, %s3
  %s6 = scalar_select 0, %s5, %s3
  $region1: #{tpu_custom_call.1} parent=0
    #allocation2 [shape = 'u8[1024]{0}', space=vmem, size = 0x400, scoped, tag = 'output window, operand 0, single buffered']
    #allocation3 [shape = 's32[1]{0}', space=sflag, size = 0x4, scoped, tag = 'scoped memory for tpu_custom_call.1']
    %7 = vsyncpa [#allocation3], 0
    // Predicated region
    $region2: #{tpu_custom_call.1} parent=1 // pred_check
      _
    $region3: #{tpu_custom_call.1} parent=1 // pred_check_branch
      %9 = sbr.rel (0) target = $region5
    $region4: #{tpu_custom_call.1} parent=1 // pred_region
      _
    $region5: #{tpu_custom_call.1} parent=1 // pred_fallthru
      _
    // Predicated region
    $region6: #{tpu_custom_call.1} parent=1 // pred_check
      _
    $region7: #{tpu_custom_call.1} parent=1 // pred_check_branch
      %11 = sbr.rel (0) target = $region9
    $region8: #{tpu_custom_call.1} parent=1 // pred_region
      _
    $region9: #{tpu_custom_call.1} parent=1 // pred_fallthru
      _
    %v12 = vld [vmem:[%s0] sm:$0x1]
    %v13 = vld [vmem:[%s0 + $0x1] sm:$0x1]
    %v14 = vld [vmem:[%s1] sm:$0x3]
    %16 = vset.pattern.permute.xlu0 0
    %17 = vperm.xlu0 %16, %v14
    %v18 = vpop.permute.xlu0 %17
    %v20 = vlaneseq
    %v21 = vshrl.u32 %v20, 7
    %v22 = vsub.s32 0, %v21
    %v23 = vrot.slane %v13, %v22
    %v24 = vmul.f32 %v18, %v23
    %v25 = vlaneseq
    %v26 = vshrl.u32 %v25, 7
    %v27 = vsub.s32 0, %v26
    %v28 = vrot.slane %v12, %v27
    %v29 = vadd.f32 %v28, %v24
    %vm30 = vcmask 582656
    %31 = vst.msk [vmem:[#allocation2] sm:$0x3] %vm30, %v29
    // Predicated region
    $region10: #{tpu_custom_call.1} parent=1 // pred_check
      _
    $region11: #{tpu_custom_call.1} parent=1 // pred_check_branch
      %33 = sbr.rel (0) target = $region13
    $region12: #{tpu_custom_call.1} parent=1 // pred_region
      %s35 = ssub.s32 32, 32
      %36 = vsyncadd [#allocation3], %s35
      %s38 = sshll.u32 [#allocation2], 4
      %s39 = int_to_ptr.vmem [resolvable:$true] %s38
      %41 = dma.vmem_to_hbm [thread:$0]  %s39, 32, %s2, [#allocation3]
    $region13: #{tpu_custom_call.1} parent=1 // pred_fallthru
      _
    // Predicated region
    $region14: #{tpu_custom_call.1} parent=1 // pred_check
      _
    $region15: #{tpu_custom_call.1} parent=1 // pred_check_branch
      %43 = sbr.rel (0) target = $region17
    $region16: #{tpu_custom_call.1} parent=1 // pred_region
      %44 = dma.done [#allocation3], 32
    $region17: #{tpu_custom_call.1} parent=1 // pred_fallthru
      _
    %45 = vsyncpa [#allocation3], 1

</llo_original>
